<compile_context>
chip_gen: v7x
topology: tpu7x:2x2x1
jax: 0.10.0
libtpu: 0.0.40
codegen_flags: <defaults>
</compile_context>

<pallas_src>
import functools

import jax
import jax.numpy as jnp
from jax.experimental import pallas as pl
from jax.experimental.pallas import tpu as pltpu


# ----------------------------------------------------------------------------
# Kernel: fused 5-matmul MLP forward for one (bt, in_f) batch tile.
# ----------------------------------------------------------------------------
def _cause_specific_kernel(x_ref, sW1_ref, sW2_ref, sWo_ref, rW1_ref, rWo_ref,
                           bias_ref, o_ref, *, h1, h2, in_f, r_hid, r_out):
    # static bias-pack offsets
    o0 = 0
    o1 = o0 + h1
    o2 = o1 + h2
    o3 = o2 + in_f
    o4 = o3 + r_hid
    o5 = o4 + r_out

    x = x_ref[...]
    b = bias_ref[...]                       # (1, total) — single vreg row
    sb1 = b[:, o0:o1]
    sb2 = b[:, o1:o2]
    sbo = b[:, o2:o3]
    rb1 = b[:, o3:o4]
    rbo = b[:, o4:o5]

    # ---- shared net (BN already folded into sW2/sWo) ----
    h = jnp.maximum(
        jnp.dot(x, sW1_ref[...], preferred_element_type=jnp.float32) + sb1, 0.0)
    h = jnp.maximum(
        jnp.dot(h, sW2_ref[...], preferred_element_type=jnp.float32) + sb2, 0.0)
    out = jnp.dot(h, sWo_ref[...], preferred_element_type=jnp.float32) + sbo + x

    # ---- all cause-specific risk nets in two matmuls ----
    # rW1: (in_f, R*hr) concatenated; rWo: (R*hr, R*out_f) block-diagonal
    g = jnp.maximum(
        jnp.dot(out, rW1_ref[...], preferred_element_type=jnp.float32) + rb1, 0.0)
    y = jnp.dot(g, rWo_ref[...], preferred_element_type=jnp.float32) + rbo

    o_ref[...] = y.astype(o_ref.dtype)      # single lane-dense store


# ----------------------------------------------------------------------------
# Wrapper: batch-tiled pallas_call, lane-dense output reshaped to (B, R, out_f)
# ----------------------------------------------------------------------------
def cause_specific_net(x, kernel_params, *, batch_tile=128):
    """x: (B, in_features) f32. Returns (B, num_risks, out_features) f32."""
    sW1, sW2, sWo, rW1c, rWobd, bias_pack, num_risks, out_features = kernel_params
    B, in_f = x.shape
    h1 = sW1.shape[1]
    h2 = sW2.shape[1]
    r_hid = rW1c.shape[1]
    r_out = rWobd.shape[1]

    # batch tile: multiple of 8 sublanes, capped at batch_tile; pad batch to it
    bt = min(batch_tile, -(-B // 8) * 8)
    b_pad = -(-B // bt) * bt
    xp = x if b_pad == B else jnp.pad(x, ((0, b_pad - B), (0, 0)))

    kernel = functools.partial(_cause_specific_kernel,
                               h1=h1, h2=h2, in_f=in_f, r_hid=r_hid, r_out=r_out)

    def resident(a):  # whole array, same block every step -> stays in VMEM
        return pl.BlockSpec(a.shape, lambda i: (0,) * a.ndim)

    out = pl.pallas_call(
        kernel,
        out_shape=jax.ShapeDtypeStruct((b_pad, r_out), jnp.float32),
        grid=(b_pad // bt,),
        in_specs=[
            pl.BlockSpec((bt, in_f), lambda i: (i, 0)),
            resident(sW1), resident(sW2), resident(sWo),
            resident(rW1c), resident(rWobd), resident(bias_pack),
        ],
        out_specs=pl.BlockSpec((bt, r_out), lambda i: (i, 0)),
        compiler_params=pltpu.CompilerParams(
            dimension_semantics=("parallel",)),
    )(xp, sW1, sW2, sWo, rW1c, rWobd, bias_pack)

    # (B, R*out_f) -> (B, R, out_f) — matches torch.stack(out, dim=1)
    return out[:B].reshape(B, num_risks, out_features)


# ----------------------------------------------------------------------------
# Parameter setup / folding glue (wrapper-side, trace-time only)
# ----------------------------------------------------------------------------
def fold_bn(gamma, beta, mean, var, eps=1e-5):
    """Eval-mode BatchNorm1d -> per-feature scale/shift, kept 2D (1, n)."""
    scale = gamma * jax.lax.rsqrt(var + eps)
    shift = beta - mean * scale
    return scale[None, :], shift[None, :]


def _fold_affine_into_linear(scale, shift, W, b):
    # (h*scale + shift) @ W + b  ==  h @ (scale.T * W) + (shift @ W + b)
    return scale[0][:, None] * W, shift @ W + b


def fold_params_for_kernel(params):
    """Raw (Linear + folded-BN) params -> packed kernel operands."""
    (sW1, sb1, ss1, ssh1, sW2, sb2, ss2, ssh2, sWo, sbo,
     rW1, rb1, rs1, rsh1, rWo, rbo) = params

    sW2f, sb2f = _fold_affine_into_linear(ss1, ssh1, sW2, sb2)
    sWof, sbof = _fold_affine_into_linear(ss2, ssh2, sWo, sbo)

    R, _, hr = rW1.shape
    out_f = rWo.shape[-1]

    rW1c = jnp.concatenate([rW1[r] for r in range(R)], axis=1)   # (in_f, R*hr)
    rb1c = jnp.concatenate([rb1[r] for r in range(R)], axis=1)   # (1, R*hr)

    # block-diagonal second-layer risk weight (off-diagonal blocks exactly 0)
    rWobd = jnp.zeros((R * hr, R * out_f), jnp.float32)
    rbo_parts = []
    for r in range(R):
        Wf, bf = _fold_affine_into_linear(rs1[r], rsh1[r], rWo[r], rbo[r])
        rWobd = rWobd.at[r * hr:(r + 1) * hr, r * out_f:(r + 1) * out_f].set(Wf)
        rbo_parts.append(bf)
    rboc = jnp.concatenate(rbo_parts, axis=1)                    # (1, R*out_f)

    bias_pack = jnp.concatenate([sb1, sb2f, sbof, rb1c, rboc], axis=1)

    return (sW1, sW2f, sWof, rW1c, rWobd, bias_pack, R, out_f)


def make_params(key, in_features, h1, h2, hr, num_risks, out_features):
    ks = jax.random.split(key, 32)
    i = 0

    def nxt():
        nonlocal i
        k = ks[i]
        i += 1
        return k

    def lin(fan_in, fan_out):
        w = jax.random.normal(nxt(), (fan_in, fan_out), jnp.float32) * (2.0 / fan_in) ** 0.5
        b = jax.random.normal(nxt(), (fan_out,), jnp.float32) * 0.05
        return w, b[None, :]

    def bn(n):
        gamma = 1.0 + 0.1 * jax.random.normal(nxt(), (n,), jnp.float32)
        beta = 0.1 * jax.random.normal(nxt(), (n,), jnp.float32)
        mean = 0.1 * jax.random.normal(nxt(), (n,), jnp.float32)
        var = 0.5 + jax.random.uniform(nxt(), (n,), jnp.float32)
        return fold_bn(gamma, beta, mean, var)

    sW1, sb1 = lin(in_features, h1)
    ss1, ssh1 = bn(h1)
    sW2, sb2 = lin(h1, h2)
    ss2, ssh2 = bn(h2)
    sWo, sbo = lin(h2, in_features)

    rW1, rb1, rs1, rsh1, rWo, rbo = [], [], [], [], [], []
    for _ in range(num_risks):
        w1, b1 = lin(in_features, hr)
        s1, sh1 = bn(hr)
        wo, bo = lin(hr, out_features)
        rW1.append(w1); rb1.append(b1); rs1.append(s1); rsh1.append(sh1)
        rWo.append(wo); rbo.append(bo)

    stack = lambda xs: jnp.stack(xs, axis=0)
    return (sW1, sb1, ss1, ssh1, sW2, sb2, ss2, ssh2, sWo, sbo,
            stack(rW1), stack(rb1), stack(rs1), stack(rsh1),
            stack(rWo), stack(rbo))


def reference_forward(x, params):
    """Pure-JAX reference mirroring the PyTorch module (eval mode, unfolded)."""
    (sW1, sb1, ss1, ssh1, sW2, sb2, ss2, ssh2, sWo, sbo,
     rW1, rb1, rs1, rsh1, rWo, rbo) = params
    h = jnp.maximum(x @ sW1 + sb1, 0.0) * ss1 + ssh1
    h = jnp.maximum(h @ sW2 + sb2, 0.0) * ss2 + ssh2
    out = (h @ sWo + sbo) + x
    ys = []
    for r in range(rW1.shape[0]):
        g = jnp.maximum(out @ rW1[r] + rb1[r], 0.0) * rs1[r] + rsh1[r]
        ys.append(g @ rWo[r] + rbo[r])
    return jnp.stack(ys, axis=1)


if __name__ == "__main__":
    in_features = 16
    num_nodes_shared = (32, 32)   # two shared hidden layers
    num_nodes_indiv = 16          # one hidden layer per risk net
    num_risks = 2
    out_features = 8
    batch = 8

    key = jax.random.PRNGKey(0)
    kx, kp = jax.random.split(key)
    x = jax.random.normal(kx, (batch, in_features), jnp.float32)
    raw_params = make_params(kp, in_features, num_nodes_shared[0],
                             num_nodes_shared[1], num_nodes_indiv,
                             num_risks, out_features)
    kernel_params = fold_params_for_kernel(raw_params)

    y = cause_specific_net(x, kernel_params)
    y = jax.block_until_ready(y)

    y_ref = reference_forward(x, raw_params)
    assert y.shape == (batch, num_risks, out_features), y.shape
    assert jnp.allclose(y, y_ref, atol=1e-4, rtol=1e-4), "mismatch vs reference"

    print("KERNEL_OK")
</pallas_src>

<mosaic_0001>
module attributes {stable_mosaic.version = 11 : i64} {
  func.func @_cause_specific_kernel(%arg0: i32, %arg1: memref<8x16xf32, #tpu.memory_space<vmem>>, %arg2: memref<16x32xf32, #tpu.memory_space<vmem>>, %arg3: memref<32x32xf32, #tpu.memory_space<vmem>>, %arg4: memref<32x16xf32, #tpu.memory_space<vmem>>, %arg5: memref<16x32xf32, #tpu.memory_space<vmem>>, %arg6: memref<32x16xf32, #tpu.memory_space<vmem>>, %arg7: memref<1x128xf32, #tpu.memory_space<vmem>>, %arg8: memref<8x16xf32, #tpu.memory_space<vmem>>) attributes {dimension_semantics = [#tpu.dimension_semantics<parallel>], iteration_bounds = array<i64: 1>, scalar_prefetch = 0 : i64, scratch_operands = 0 : i64, tpu.core_type = #tpu.core_type<tc>, window_params = [{transform_indices = @transform_0, window_bounds = array<i64: 8, 16>}, {pipeline_mode = #tpu.pipeline_mode<synchronous>, transform_indices = @transform_1, window_bounds = array<i64: 16, 32>}, {pipeline_mode = #tpu.pipeline_mode<synchronous>, transform_indices = @transform_2, window_bounds = array<i64: 32, 32>}, {pipeline_mode = #tpu.pipeline_mode<synchronous>, transform_indices = @transform_3, window_bounds = array<i64: 32, 16>}, {pipeline_mode = #tpu.pipeline_mode<synchronous>, transform_indices = @transform_4, window_bounds = array<i64: 16, 32>}, {pipeline_mode = #tpu.pipeline_mode<synchronous>, transform_indices = @transform_5, window_bounds = array<i64: 32, 16>}, {pipeline_mode = #tpu.pipeline_mode<synchronous>, transform_indices = @transform_6, window_bounds = array<i64: 1, 128>}, {transform_indices = @transform_7, window_bounds = array<i64: 8, 16>}]} {
    %c0 = arith.constant 0 : index
    %c0_0 = arith.constant 0 : index
    %0 = vector.load %arg1[%c0, %c0_0] : memref<8x16xf32, #tpu.memory_space<vmem>>, vector<8x16xf32>
    %c0_1 = arith.constant 0 : index
    %c0_2 = arith.constant 0 : index
    %1 = vector.load %arg7[%c0_1, %c0_2] : memref<1x128xf32, #tpu.memory_space<vmem>>, vector<1x128xf32>
    %2 = vector.extract_strided_slice %1 {offsets = [0, 0], sizes = [1, 32], strides = [1, 1]} : vector<1x128xf32> to vector<1x32xf32>
    %3 = vector.extract_strided_slice %1 {offsets = [0, 32], sizes = [1, 32], strides = [1, 1]} : vector<1x128xf32> to vector<1x32xf32>
    %4 = vector.extract_strided_slice %1 {offsets = [0, 64], sizes = [1, 16], strides = [1, 1]} : vector<1x128xf32> to vector<1x16xf32>
    %5 = vector.extract_strided_slice %1 {offsets = [0, 80], sizes = [1, 32], strides = [1, 1]} : vector<1x128xf32> to vector<1x32xf32>
    %6 = vector.extract_strided_slice %1 {offsets = [0, 112], sizes = [1, 16], strides = [1, 1]} : vector<1x128xf32> to vector<1x16xf32>
    %c0_3 = arith.constant 0 : index
    %c0_4 = arith.constant 0 : index
    %7 = vector.load %arg2[%c0_3, %c0_4] : memref<16x32xf32, #tpu.memory_space<vmem>>, vector<16x32xf32>
    %cst = arith.constant dense<0.000000e+00> : vector<8x32xf32>
    %8 = tpu.matmul %0, %7, %cst {dimension_numbers = #tpu.dot_dimension_numbers<[1], [0], [0], [1], [0, 0, 1, 1], [], []>} : vector<8x16xf32>, vector<16x32xf32>, vector<8x32xf32> -> vector<8x32xf32>
    %9 = vector.broadcast %2 : vector<1x32xf32> to vector<8x32xf32>
    %10 = arith.addf %8, %9 : vector<8x32xf32>
    %cst_5 = arith.constant 0.000000e+00 : f32
    %11 = vector.broadcast %cst_5 : f32 to vector<8x32xf32>
    %12 = arith.maximumf %10, %11 : vector<8x32xf32>
    %c0_6 = arith.constant 0 : index
    %c0_7 = arith.constant 0 : index
    %13 = vector.load %arg3[%c0_6, %c0_7] : memref<32x32xf32, #tpu.memory_space<vmem>>, vector<32x32xf32>
    %cst_8 = arith.constant dense<0.000000e+00> : vector<8x32xf32>
    %14 = tpu.matmul %12, %13, %cst_8 {dimension_numbers = #tpu.dot_dimension_numbers<[1], [0], [0], [1], [0, 0, 1, 1], [], []>} : vector<8x32xf32>, vector<32x32xf32>, vector<8x32xf32> -> vector<8x32xf32>
    %15 = vector.broadcast %3 : vector<1x32xf32> to vector<8x32xf32>
    %16 = arith.addf %14, %15 : vector<8x32xf32>
    %cst_9 = arith.constant 0.000000e+00 : f32
    %17 = vector.broadcast %cst_9 : f32 to vector<8x32xf32>
    %18 = arith.maximumf %16, %17 : vector<8x32xf32>
    %c0_10 = arith.constant 0 : index
    %c0_11 = arith.constant 0 : index
    %19 = vector.load %arg4[%c0_10, %c0_11] : memref<32x16xf32, #tpu.memory_space<vmem>>, vector<32x16xf32>
    %cst_12 = arith.constant dense<0.000000e+00> : vector<8x16xf32>
    %20 = tpu.matmul %18, %19, %cst_12 {dimension_numbers = #tpu.dot_dimension_numbers<[1], [0], [0], [1], [0, 0, 1, 1], [], []>} : vector<8x32xf32>, vector<32x16xf32>, vector<8x16xf32> -> vector<8x16xf32>
    %21 = vector.broadcast %4 : vector<1x16xf32> to vector<8x16xf32>
    %22 = arith.addf %20, %21 : vector<8x16xf32>
    %23 = arith.addf %22, %0 : vector<8x16xf32>
    %c0_13 = arith.constant 0 : index
    %c0_14 = arith.constant 0 : index
    %24 = vector.load %arg5[%c0_13, %c0_14] : memref<16x32xf32, #tpu.memory_space<vmem>>, vector<16x32xf32>
    %cst_15 = arith.constant dense<0.000000e+00> : vector<8x32xf32>
    %25 = tpu.matmul %23, %24, %cst_15 {dimension_numbers = #tpu.dot_dimension_numbers<[1], [0], [0], [1], [0, 0, 1, 1], [], []>} : vector<8x16xf32>, vector<16x32xf32>, vector<8x32xf32> -> vector<8x32xf32>
    %26 = vector.broadcast %5 : vector<1x32xf32> to vector<8x32xf32>
    %27 = arith.addf %25, %26 : vector<8x32xf32>
    %cst_16 = arith.constant 0.000000e+00 : f32
    %28 = vector.broadcast %cst_16 : f32 to vector<8x32xf32>
    %29 = arith.maximumf %27, %28 : vector<8x32xf32>
    %c0_17 = arith.constant 0 : index
    %c0_18 = arith.constant 0 : index
    %30 = vector.load %arg6[%c0_17, %c0_18] : memref<32x16xf32, #tpu.memory_space<vmem>>, vector<32x16xf32>
    %cst_19 = arith.constant dense<0.000000e+00> : vector<8x16xf32>
    %31 = tpu.matmul %29, %30, %cst_19 {dimension_numbers = #tpu.dot_dimension_numbers<[1], [0], [0], [1], [0, 0, 1, 1], [], []>} : vector<8x32xf32>, vector<32x16xf32>, vector<8x16xf32> -> vector<8x16xf32>
    %32 = vector.broadcast %6 : vector<1x16xf32> to vector<8x16xf32>
    %33 = arith.addf %31, %32 : vector<8x16xf32>
    %c0_20 = arith.constant 0 : index
    %c0_21 = arith.constant 0 : index
    %34 = vector.load %arg8[%c0_20, %c0_21] : memref<8x16xf32, #tpu.memory_space<vmem>>, vector<8x16xf32>
    tpu.vector_store %arg8[%c0_20, %c0_21], %33 {strides = array<i32>} : memref<8x16xf32, #tpu.memory_space<vmem>>, vector<8x16xf32>,
    return
  }
  func.func @transform_0(%arg0: i32) -> (i32, i32) {
    %c0_i32 = arith.constant 0 : i32
    %c0_i32_0 = arith.constant 0 : i32
    return %arg0, %c0_i32 : i32, i32
  }
  func.func @transform_1(%arg0: i32) -> (i32, i32) {
    %c0_i32 = arith.constant 0 : i32
    %c0_i32_0 = arith.constant 0 : i32
    %c0_i32_1 = arith.constant 0 : i32
    return %c0_i32, %c0_i32_0 : i32, i32
  }
  func.func @transform_2(%arg0: i32) -> (i32, i32) {
    %c0_i32 = arith.constant 0 : i32
    %c0_i32_0 = arith.constant 0 : i32
    %c0_i32_1 = arith.constant 0 : i32
    return %c0_i32, %c0_i32_0 : i32, i32
  }
  func.func @transform_3(%arg0: i32) -> (i32, i32) {
    %c0_i32 = arith.constant 0 : i32
    %c0_i32_0 = arith.constant 0 : i32
    %c0_i32_1 = arith.constant 0 : i32
    return %c0_i32, %c0_i32_0 : i32, i32
  }
  func.func @transform_4(%arg0: i32) -> (i32, i32) {
    %c0_i32 = arith.constant 0 : i32
    %c0_i32_0 = arith.constant 0 : i32
    %c0_i32_1 = arith.constant 0 : i32
    return %c0_i32, %c0_i32_0 : i32, i32
  }
  func.func @transform_5(%arg0: i32) -> (i32, i32) {
    %c0_i32 = arith.constant 0 : i32
    %c0_i32_0 = arith.constant 0 : i32
    %c0_i32_1 = arith.constant 0 : i32
    return %c0_i32, %c0_i32_0 : i32, i32
  }
  func.func @transform_6(%arg0: i32) -> (i32, i32) {
    %c0_i32 = arith.constant 0 : i32
    %c0_i32_0 = arith.constant 0 : i32
    %c0_i32_1 = arith.constant 0 : i32
    return %c0_i32, %c0_i32_0 : i32, i32
  }
  func.func @transform_7(%arg0: i32) -> (i32, i32) {
    %c0_i32 = arith.constant 0 : i32
    %c0_i32_0 = arith.constant 0 : i32
    return %arg0, %c0_i32 : i32, i32
  }
}

</mosaic_0001>

<llo_original>
// kernel: tpu_custom_call.1
$region0: #{tpu_custom_call.1}
  #allocation0 [shape = 'u32[]', space=smem, size = 0x4, offset = 0x4, fixed_abs, tag = 'smem constant byte address 0x4 - core index']
  #allocation1 [shape = 'u32[144,128]{1,0:T(1,128)}', space=vmem, size = 0x12000, scoped, tag = 'internal scratch']
  %s0 = inlined_call_operand.vmem [shape: f32[8,16], index: 0, kind: input, shape index: {}]
  %s1 = inlined_call_operand.vmem [shape: f32[16,32], index: 1, kind: input, shape index: {}]
  %s2 = inlined_call_operand.vmem [shape: f32[32,32], index: 2, kind: input, shape index: {}]
  %s3 = inlined_call_operand.vmem [shape: f32[32,16], index: 3, kind: input, shape index: {}]
  %s4 = inlined_call_operand.vmem [shape: f32[16,32], index: 4, kind: input, shape index: {}]
  %s5 = inlined_call_operand.vmem [shape: f32[32,16], index: 5, kind: input, shape index: {}]
  %s6 = inlined_call_operand.vmem [shape: f32[1,128], index: 6, kind: input, shape index: {}]
  %s7 = inlined_call_operand.hbm [shape: f32[8,16], index: 7, kind: output, shape index: {}]
  %s8 = sld [smem:[#allocation0]]
  $region38: #{tpu_custom_call.1} parent=0
    _
  %s10 = ssub.s32 1, %s8
  %s11 = scalar_select 0, %s10, %s8
  $region1: #{tpu_custom_call.1} parent=0
    #allocation2 [shape = 'u8[4096]{0}', space=vmem, size = 0x1000, scoped, tag = 'output window, operand 0, single buffered']
    #allocation3 [shape = 's32[1]{0}', space=sflag, size = 0x4, scoped, tag = 'scoped memory for tpu_custom_call.1']
    %12 = vsyncpa [#allocation3], 0
    // Predicated region
    $region2: #{tpu_custom_call.1} parent=1 // pred_check
      _
    $region3: #{tpu_custom_call.1} parent=1 // pred_check_branch
      %14 = sbr.rel (0) target = $region5
    $region4: #{tpu_custom_call.1} parent=1 // pred_region
      _
    $region5: #{tpu_custom_call.1} parent=1 // pred_fallthru
      _
    // Predicated region
    $region6: #{tpu_custom_call.1} parent=1 // pred_check
      _
    $region7: #{tpu_custom_call.1} parent=1 // pred_check_branch
      %16 = sbr.rel (0) target = $region9
    $region8: #{tpu_custom_call.1} parent=1 // pred_region
      _
    $region9: #{tpu_custom_call.1} parent=1 // pred_fallthru
      _
    // Predicated region
    $region10: #{tpu_custom_call.1} parent=1 // pred_check
      _
    $region11: #{tpu_custom_call.1} parent=1 // pred_check_branch
      %18 = sbr.rel (0) target = $region13
    $region12: #{tpu_custom_call.1} parent=1 // pred_region
      _
    $region13: #{tpu_custom_call.1} parent=1 // pred_fallthru
      _
    // Predicated region
    $region14: #{tpu_custom_call.1} parent=1 // pred_check
      _
    $region15: #{tpu_custom_call.1} parent=1 // pred_check_branch
      %20 = sbr.rel (0) target = $region17
    $region16: #{tpu_custom_call.1} parent=1 // pred_region
      _
    $region17: #{tpu_custom_call.1} parent=1 // pred_fallthru
      _
    // Predicated region
    $region18: #{tpu_custom_call.1} parent=1 // pred_check
      _
    $region19: #{tpu_custom_call.1} parent=1 // pred_check_branch
      %22 = sbr.rel (0) target = $region21
    $region20: #{tpu_custom_call.1} parent=1 // pred_region
      _
    $region21: #{tpu_custom_call.1} parent=1 // pred_fallthru
      _
    // Predicated region
    $region22: #{tpu_custom_call.1} parent=1 // pred_check
      _
    $region23: #{tpu_custom_call.1} parent=1 // pred_check_branch
      %24 = sbr.rel (0) target = $region25
    $region24: #{tpu_custom_call.1} parent=1 // pred_region
      _
    $region25: #{tpu_custom_call.1} parent=1 // pred_fallthru
      _
    // Predicated region
    $region26: #{tpu_custom_call.1} parent=1 // pred_check
      _
    $region27: #{tpu_custom_call.1} parent=1 // pred_check_branch
      %26 = sbr.rel (0) target = $region29
    $region28: #{tpu_custom_call.1} parent=1 // pred_region
      _
    $region29: #{tpu_custom_call.1} parent=1 // pred_fallthru
      _
    %v27 = vld [vmem:[%s0] sm:$0xff]
    %v28 = vld [vmem:[%s6] sm:$0x1]
    %v29 = vld [vmem:[%s1] sm:$0xff]
    %v30 = vld [vmem:[%s1 + $0x8] sm:$0xff]
    %v32 = vlaneseq
    %v33 = vshrl.u32 %v32, 7
    %v34 = vsub.s32 0, %v33
    %v35 = vrot.slane %v28, %v34
    %vm37 = vcmask 130048
    %v39 = vsel %vm37, %v27, 0
    %41 = vmatprep.subr.mxu0 0.0
    %42 = vmatpush1.msra.mxu0 %v29
    %43 = vmatprep.subr.mxu0 0.0
    %44 = vmatpush1.msra.mxu0 %v30
    %45 = vmatprep.subr.mxu0 0.0
    %46 = vmatpush1.msra.mxu0 0.0
    %47 = vmatprep.subr.mxu0 0.0
    %48 = vmatpush1.msra.mxu0 0.0
    %49 = vmatprep.subr.mxu0 0.0
    %50 = vmatpush1.msra.mxu0 0.0
    %51 = vmatprep.subr.mxu0 0.0
    %52 = vmatpush1.msra.mxu0 0.0
    %53 = vmatprep.subr.mxu0 0.0
    %54 = vmatpush1.msra.mxu0 0.0
    %55 = vmatprep.subr.mxu0 0.0
    %56 = vmatpush1.msra.mxu0 0.0
    %57 = vmatprep.subr.mxu0 0.0
    %58 = vmatpush1.msra.mxu0 0.0
    %59 = vmatprep.subr.mxu0 0.0
    %60 = vmatpush1.msra.mxu0 0.0
    %61 = vmatprep.subr.mxu0 0.0
    %62 = vmatpush1.msra.mxu0 0.0
    %63 = vmatprep.subr.mxu0 0.0
    %64 = vmatpush1.msra.mxu0 0.0
    %65 = vmatprep.subr.mxu0 0.0
    %66 = vmatpush1.msra.mxu0 0.0
    %67 = vmatprep.subr.mxu0 0.0
    %68 = vmatpush1.msra.mxu0 0.0
    %69 = vmatprep.subr.mxu0 0.0
    %70 = vmatpush1.msra.mxu0 0.0
    %71 = vmatprep.subr.mxu0 0.0
    %72 = vmatpush1.msra.mxu0 0.0
    %73 = vmatprep.subr.mxu0 0.0
    %74 = vmatpush1.msra.mxu0 0.0
    %75 = vmatprep.subr.mxu0 0.0
    %76 = vmatpush1.msra.mxu0 0.0
    %77 = vmatprep.subr.mxu0 0.0
    %78 = vmatpush1.msra.mxu0 0.0
    %79 = vmatprep.subr.mxu0 0.0
    %80 = vmatpush1.msra.mxu0 0.0
    %81 = vmatprep.subr.mxu0 0.0
    %82 = vmatpush1.msra.mxu0 0.0
    %83 = vmatprep.subr.mxu0 0.0
    %84 = vmatpush1.msra.mxu0 0.0
    %85 = vmatprep.subr.mxu0 0.0
    %86 = vmatpush1.msra.mxu0 0.0
    %87 = vmatprep.subr.mxu0 0.0
    %88 = vmatpush1.msra.mxu0 0.0
    %89 = vmatprep.subr.mxu0 0.0
    %90 = vmatpush1.msra.mxu0 0.0
    %91 = vmatprep.subr.mxu0 0.0
    %92 = vmatpush1.msra.mxu0 0.0
    %93 = vmatprep.subr.mxu0 0.0
    %94 = vmatpush1.msra.mxu0 0.0
    %95 = vmatprep.subr.mxu0 0.0
    %96 = vmatpush1.msra.mxu0 0.0
    %97 = vmatprep.subr.mxu0 0.0
    %98 = vmatpush1.msra.mxu0 0.0
    %99 = vmatprep.subr.mxu0 0.0
    %100 = vmatpush1.msra.mxu0 0.0
    %101 = vmatprep.subr.mxu0 0.0
    %102 = vmatpush1.msra.mxu0 0.0
    %103 = vmatprep.subr.mxu0 0.0
    %104 = vmatpush1.msra.mxu0 0.0
    %105 = vmatprep.mubr.f32.mxu0 0.0
    %106 = vmatmul.mubr.f32.gmra.mrb[0].mxu0 %v39
    %v107 = vpop.f32.mrb[0].mxu0
    %v108 = vadd.f32 %v35, %v107
    %v109 = vpop.f32.mrb[0].mxu0
    %110 = vdwg.mxu0
    %v111 = vmax.f32 %v108, 0.0
    %v112 = vld [vmem:[%s2] sm:$0xff]
    %v113 = vld [vmem:[%s2 + $0x8] sm:$0xff]
    %v114 = vld [vmem:[%s2 + $0x10] sm:$0xff]
    %v115 = vld [vmem:[%s2 + $0x18] sm:$0xff]
    %116 = vrot.lane.b32.xlu0 %v35, 96
    %v117 = vpop.permute.xlu0 %116
    %vm119 = vcmask 261120
    %v121 = vsel %vm119, %v111, 0
    %123 = vmatprep.subr.mxu0 0.0
    %124 = vmatpush1.msra.mxu0 %v112
    %125 = vmatprep.subr.mxu0 0.0
    %126 = vmatpush1.msra.mxu0 %v113
    %127 = vmatprep.subr.mxu0 0.0
    %128 = vmatpush1.msra.mxu0 %v114
    %129 = vmatprep.subr.mxu0 0.0
    %130 = vmatpush1.msra.mxu0 %v115
    %131 = vmatprep.subr.mxu0 0.0
    %132 = vmatpush1.msra.mxu0 0.0
    %133 = vmatprep.subr.mxu0 0.0
    %134 = vmatpush1.msra.mxu0 0.0
    %135 = vmatprep.subr.mxu0 0.0
    %136 = vmatpush1.msra.mxu0 0.0
    %137 = vmatprep.subr.mxu0 0.0
    %138 = vmatpush1.msra.mxu0 0.0
    %139 = vmatprep.subr.mxu0 0.0
    %140 = vmatpush1.msra.mxu0 0.0
    %141 = vmatprep.subr.mxu0 0.0
    %142 = vmatpush1.msra.mxu0 0.0
    %143 = vmatprep.subr.mxu0 0.0
    %144 = vmatpush1.msra.mxu0 0.0
    %145 = vmatprep.subr.mxu0 0.0
    %146 = vmatpush1.msra.mxu0 0.0
    %147 = vmatprep.subr.mxu0 0.0
    %148 = vmatpush1.msra.mxu0 0.0
    %149 = vmatprep.subr.mxu0 0.0
    %150 = vmatpush1.msra.mxu0 0.0
    %151 = vmatprep.subr.mxu0 0.0
    %152 = vmatpush1.msra.mxu0 0.0
    %153 = vmatprep.subr.mxu0 0.0
    %154 = vmatpush1.msra.mxu0 0.0
    %155 = vmatprep.subr.mxu0 0.0
    %156 = vmatpush1.msra.mxu0 0.0
    %157 = vmatprep.subr.mxu0 0.0
    %158 = vmatpush1.msra.mxu0 0.0
    %159 = vmatprep.subr.mxu0 0.0
    %160 = vmatpush1.msra.mxu0 0.0
    %161 = vmatprep.subr.mxu0 0.0
    %162 = vmatpush1.msra.mxu0 0.0
    %163 = vmatprep.subr.mxu0 0.0
    %164 = vmatpush1.msra.mxu0 0.0
    %165 = vmatprep.subr.mxu0 0.0
    %166 = vmatpush1.msra.mxu0 0.0
    %167 = vmatprep.subr.mxu0 0.0
    %168 = vmatpush1.msra.mxu0 0.0
    %169 = vmatprep.subr.mxu0 0.0
    %170 = vmatpush1.msra.mxu0 0.0
    %171 = vmatprep.subr.mxu0 0.0
    %172 = vmatpush1.msra.mxu0 0.0
    %173 = vmatprep.subr.mxu0 0.0
    %174 = vmatpush1.msra.mxu0 0.0
    %175 = vmatprep.subr.mxu0 0.0
    %176 = vmatpush1.msra.mxu0 0.0
    %177 = vmatprep.subr.mxu0 0.0
    %178 = vmatpush1.msra.mxu0 0.0
    %179 = vmatprep.subr.mxu0 0.0
    %180 = vmatpush1.msra.mxu0 0.0
    %181 = vmatprep.subr.mxu0 0.0
    %182 = vmatpush1.msra.mxu0 0.0
    %183 = vmatprep.subr.mxu0 0.0
    %184 = vmatpush1.msra.mxu0 0.0
    %185 = vmatprep.subr.mxu0 0.0
    %186 = vmatpush1.msra.mxu0 0.0
    %187 = vmatprep.mubr.f32.mxu0 0.0
    %188 = vmatmul.mubr.f32.gmra.mrb[0].mxu0 %v121
    %v189 = vpop.f32.mrb[0].mxu0
    %v190 = vadd.f32 %v117, %v189
    %v191 = vpop.f32.mrb[0].mxu0
    %192 = vdwg.mxu0
    %v193 = vmax.f32 %v190, 0.0
    %v194 = vld [vmem:[%s3] sm:$0xff]
    %v195 = vld [vmem:[%s3 + $0x8] sm:$0xff]
    %v196 = vld [vmem:[%s3 + $0x10] sm:$0xff]
    %v197 = vld [vmem:[%s3 + $0x18] sm:$0xff]
    %198 = vrot.lane.b32.xlu0 %v35, 64
    %v199 = vpop.permute.xlu0 %198
    %v202 = vsel %vm119, %v193, 0
    %204 = vmatprep.subr.mxu0 0.0
    %205 = vmatpush1.msra.mxu0 %v194
    %206 = vmatprep.subr.mxu0 0.0
    %207 = vmatpush1.msra.mxu0 %v195
    %208 = vmatprep.subr.mxu0 0.0
    %209 = vmatpush1.msra.mxu0 %v196
    %210 = vmatprep.subr.mxu0 0.0
    %211 = vmatpush1.msra.mxu0 %v197
    %212 = vmatprep.subr.mxu0 0.0
    %213 = vmatpush1.msra.mxu0 0.0
    %214 = vmatprep.subr.mxu0 0.0
    %215 = vmatpush1.msra.mxu0 0.0
    %216 = vmatprep.subr.mxu0 0.0
    %217 = vmatpush1.msra.mxu0 0.0
    %218 = vmatprep.subr.mxu0 0.0
    %219 = vmatpush1.msra.mxu0 0.0
    %220 = vmatprep.subr.mxu0 0.0
    %221 = vmatpush1.msra.mxu0 0.0
    %222 = vmatprep.subr.mxu0 0.0
    %223 = vmatpush1.msra.mxu0 0.0
    %224 = vmatprep.subr.mxu0 0.0
    %225 = vmatpush1.msra.mxu0 0.0
    %226 = vmatprep.subr.mxu0 0.0
    %227 = vmatpush1.msra.mxu0 0.0
    %228 = vmatprep.subr.mxu0 0.0
    %229 = vmatpush1.msra.mxu0 0.0
    %230 = vmatprep.subr.mxu0 0.0
    %231 = vmatpush1.msra.mxu0 0.0
    %232 = vmatprep.subr.mxu0 0.0
    %233 = vmatpush1.msra.mxu0 0.0
    %234 = vmatprep.subr.mxu0 0.0
    %235 = vmatpush1.msra.mxu0 0.0
    %236 = vmatprep.subr.mxu0 0.0
    %237 = vmatpush1.msra.mxu0 0.0
    %238 = vmatprep.subr.mxu0 0.0
    %239 = vmatpush1.msra.mxu0 0.0
    %240 = vmatprep.subr.mxu0 0.0
    %241 = vmatpush1.msra.mxu0 0.0
    %242 = vmatprep.subr.mxu0 0.0
    %243 = vmatpush1.msra.mxu0 0.0
    %244 = vmatprep.subr.mxu0 0.0
    %245 = vmatpush1.msra.mxu0 0.0
    %246 = vmatprep.subr.mxu0 0.0
    %247 = vmatpush1.msra.mxu0 0.0
    %248 = vmatprep.subr.mxu0 0.0
    %249 = vmatpush1.msra.mxu0 0.0
    %250 = vmatprep.subr.mxu0 0.0
    %251 = vmatpush1.msra.mxu0 0.0
    %252 = vmatprep.subr.mxu0 0.0
    %253 = vmatpush1.msra.mxu0 0.0
    %254 = vmatprep.subr.mxu0 0.0
    %255 = vmatpush1.msra.mxu0 0.0
    %256 = vmatprep.subr.mxu0 0.0
    %257 = vmatpush1.msra.mxu0 0.0
    %258 = vmatprep.subr.mxu0 0.0
    %259 = vmatpush1.msra.mxu0 0.0
    %260 = vmatprep.subr.mxu0 0.0
    %261 = vmatpush1.msra.mxu0 0.0
    %262 = vmatprep.subr.mxu0 0.0
    %263 = vmatpush1.msra.mxu0 0.0
    %264 = vmatprep.subr.mxu0 0.0
    %265 = vmatpush1.msra.mxu0 0.0
    %266 = vmatprep.subr.mxu0 0.0
    %267 = vmatpush1.msra.mxu0 0.0
    %268 = vmatprep.mubr.f32.mxu0 0.0
    %269 = vmatmul.mubr.f32.gmra.mrb[0].mxu0 %v202
    %v270 = vpop.f32.mrb[0].mxu0
    %v271 = vadd.f32 %v199, %v270
    %v272 = vpop.f32.mrb[0].mxu0
    %273 = vdwg.mxu0
    %v274 = vadd.f32 %v271, %v27
    %v275 = vld [vmem:[%s4] sm:$0xff]
    %v276 = vld [vmem:[%s4 + $0x8] sm:$0xff]
    %277 = vrot.lane.b32.xlu0 %v35, 48
    %v278 = vpop.permute.xlu0 %277
    %v281 = vsel %vm37, %v274, 0
    %283 = vmatprep.subr.mxu0 0.0
    %284 = vmatpush1.msra.mxu0 %v275
    %285 = vmatprep.subr.mxu0 0.0
    %286 = vmatpush1.msra.mxu0 %v276
    %287 = vmatprep.subr.mxu0 0.0
    %288 = vmatpush1.msra.mxu0 0.0
    %289 = vmatprep.subr.mxu0 0.0
    %290 = vmatpush1.msra.mxu0 0.0
    %291 = vmatprep.subr.mxu0 0.0
    %292 = vmatpush1.msra.mxu0 0.0
    %293 = vmatprep.subr.mxu0 0.0
    %294 = vmatpush1.msra.mxu0 0.0
    %295 = vmatprep.subr.mxu0 0.0
    %296 = vmatpush1.msra.mxu0 0.0
    %297 = vmatprep.subr.mxu0 0.0
    %298 = vmatpush1.msra.mxu0 0.0
    %299 = vmatprep.subr.mxu0 0.0
    %300 = vmatpush1.msra.mxu0 0.0
    %301 = vmatprep.subr.mxu0 0.0
    %302 = vmatpush1.msra.mxu0 0.0
    %303 = vmatprep.subr.mxu0 0.0
    %304 = vmatpush1.msra.mxu0 0.0
    %305 = vmatprep.subr.mxu0 0.0
    %306 = vmatpush1.msra.mxu0 0.0
    %307 = vmatprep.subr.mxu0 0.0
    %308 = vmatpush1.msra.mxu0 0.0
    %309 = vmatprep.subr.mxu0 0.0
    %310 = vmatpush1.msra.mxu0 0.0
    %311 = vmatprep.subr.mxu0 0.0
    %312 = vmatpush1.msra.mxu0 0.0
    %313 = vmatprep.subr.mxu0 0.0
    %314 = vmatpush1.msra.mxu0 0.0
    %315 = vmatprep.subr.mxu0 0.0
    %316 = vmatpush1.msra.mxu0 0.0
    %317 = vmatprep.subr.mxu0 0.0
    %318 = vmatpush1.msra.mxu0 0.0
    %319 = vmatprep.subr.mxu0 0.0
    %320 = vmatpush1.msra.mxu0 0.0
    %321 = vmatprep.subr.mxu0 0.0
    %322 = vmatpush1.msra.mxu0 0.0
    %323 = vmatprep.subr.mxu0 0.0
    %324 = vmatpush1.msra.mxu0 0.0
    %325 = vmatprep.subr.mxu0 0.0
    %326 = vmatpush1.msra.mxu0 0.0
    %327 = vmatprep.subr.mxu0 0.0
    %328 = vmatpush1.msra.mxu0 0.0
    %329 = vmatprep.subr.mxu0 0.0
    %330 = vmatpush1.msra.mxu0 0.0
    %331 = vmatprep.subr.mxu0 0.0
    %332 = vmatpush1.msra.mxu0 0.0
    %333 = vmatprep.subr.mxu0 0.0
    %334 = vmatpush1.msra.mxu0 0.0
    %335 = vmatprep.subr.mxu0 0.0
    %336 = vmatpush1.msra.mxu0 0.0
    %337 = vmatprep.subr.mxu0 0.0
    %338 = vmatpush1.msra.mxu0 0.0
    %339 = vmatprep.subr.mxu0 0.0
    %340 = vmatpush1.msra.mxu0 0.0
    %341 = vmatprep.subr.mxu0 0.0
    %342 = vmatpush1.msra.mxu0 0.0
    %343 = vmatprep.subr.mxu0 0.0
    %344 = vmatpush1.msra.mxu0 0.0
    %345 = vmatprep.subr.mxu0 0.0
    %346 = vmatpush1.msra.mxu0 0.0
    %347 = vmatprep.mubr.f32.mxu0 0.0
    %348 = vmatmul.mubr.f32.gmra.mrb[0].mxu0 %v281
    %v349 = vpop.f32.mrb[0].mxu0
    %v350 = vadd.f32 %v278, %v349
    %v351 = vpop.f32.mrb[0].mxu0
    %352 = vdwg.mxu0
    %v353 = vmax.f32 %v350, 0.0
    %v354 = vld [vmem:[%s5] sm:$0xff]
    %v355 = vld [vmem:[%s5 + $0x8] sm:$0xff]
    %v356 = vld [vmem:[%s5 + $0x10] sm:$0xff]
    %v357 = vld [vmem:[%s5 + $0x18] sm:$0xff]
    %358 = vrot.lane.b32.xlu0 %v35, 16
    %v359 = vpop.permute.xlu0 %358
    %v362 = vsel %vm119, %v353, 0
    %364 = vmatprep.subr.mxu0 0.0
    %365 = vmatpush1.msra.mxu0 %v354
    %366 = vmatprep.subr.mxu0 0.0
    %367 = vmatpush1.msra.mxu0 %v355
    %368 = vmatprep.subr.mxu0 0.0
    %369 = vmatpush1.msra.mxu0 %v356
    %370 = vmatprep.subr.mxu0 0.0
    %371 = vmatpush1.msra.mxu0 %v357
    %372 = vmatprep.subr.mxu0 0.0
    %373 = vmatpush1.msra.mxu0 0.0
    %374 = vmatprep.subr.mxu0 0.0
    %375 = vmatpush1.msra.mxu0 0.0
    %376 = vmatprep.subr.mxu0 0.0
    %377 = vmatpush1.msra.mxu0 0.0
    %378 = vmatprep.subr.mxu0 0.0
    %379 = vmatpush1.msra.mxu0 0.0
    %380 = vmatprep.subr.mxu0 0.0
    %381 = vmatpush1.msra.mxu0 0.0
    %382 = vmatprep.subr.mxu0 0.0
    %383 = vmatpush1.msra.mxu0 0.0
    %384 = vmatprep.subr.mxu0 0.0
    %385 = vmatpush1.msra.mxu0 0.0
    %386 = vmatprep.subr.mxu0 0.0
    %387 = vmatpush1.msra.mxu0 0.0
    %388 = vmatprep.subr.mxu0 0.0
    %389 = vmatpush1.msra.mxu0 0.0
    %390 = vmatprep.subr.mxu0 0.0
    %391 = vmatpush1.msra.mxu0 0.0
    %392 = vmatprep.subr.mxu0 0.0
    %393 = vmatpush1.msra.mxu0 0.0
    %394 = vmatprep.subr.mxu0 0.0
    %395 = vmatpush1.msra.mxu0 0.0
    %396 = vmatprep.subr.mxu0 0.0
    %397 = vmatpush1.msra.mxu0 0.0
    %398 = vmatprep.subr.mxu0 0.0
    %399 = vmatpush1.msra.mxu0 0.0
    %400 = vmatprep.subr.mxu0 0.0
    %401 = vmatpush1.msra.mxu0 0.0
    %402 = vmatprep.subr.mxu0 0.0
    %403 = vmatpush1.msra.mxu0 0.0
    %404 = vmatprep.subr.mxu0 0.0
    %405 = vmatpush1.msra.mxu0 0.0
    %406 = vmatprep.subr.mxu0 0.0
    %407 = vmatpush1.msra.mxu0 0.0
    %408 = vmatprep.subr.mxu0 0.0
    %409 = vmatpush1.msra.mxu0 0.0
    %410 = vmatprep.subr.mxu0 0.0
    %411 = vmatpush1.msra.mxu0 0.0
    %412 = vmatprep.subr.mxu0 0.0
    %413 = vmatpush1.msra.mxu0 0.0
    %414 = vmatprep.subr.mxu0 0.0
    %415 = vmatpush1.msra.mxu0 0.0
    %416 = vmatprep.subr.mxu0 0.0
    %417 = vmatpush1.msra.mxu0 0.0
    %418 = vmatprep.subr.mxu0 0.0
    %419 = vmatpush1.msra.mxu0 0.0
    %420 = vmatprep.subr.mxu0 0.0
    %421 = vmatpush1.msra.mxu0 0.0
    %422 = vmatprep.subr.mxu0 0.0
    %423 = vmatpush1.msra.mxu0 0.0
    %424 = vmatprep.subr.mxu0 0.0
    %425 = vmatpush1.msra.mxu0 0.0
    %426 = vmatprep.subr.mxu0 0.0
    %427 = vmatpush1.msra.mxu0 0.0
    %428 = vmatprep.mubr.f32.mxu0 0.0
    %429 = vmatmul.mubr.f32.gmra.mrb[0].mxu0 %v362
    %v430 = vpop.f32.mrb[0].mxu0
    %v431 = vadd.f32 %v359, %v430
    %v432 = vpop.f32.mrb[0].mxu0
    %433 = vdwg.mxu0
    %434 = vst.msk [vmem:[#allocation2] sm:$0xff] %vm37, %v431
    // Predicated region
    $region30: #{tpu_custom_call.1} parent=1 // pred_check
      _
    $region31: #{tpu_custom_call.1} parent=1 // pred_check_branch
      %436 = sbr.rel (0) target = $region33
    $region32: #{tpu_custom_call.1} parent=1 // pred_region
      %s438 = ssub.s32 128, 128
      %439 = vsyncadd [#allocation3], %s438
      %s441 = sshll.u32 [#allocation2], 4
      %s442 = int_to_ptr.vmem [resolvable:$true] %s441
      %444 = dma.vmem_to_hbm [thread:$0]  %s442, 128, %s7, [#allocation3]
    $region33: #{tpu_custom_call.1} parent=1 // pred_fallthru
      _
    // Predicated region
    $region34: #{tpu_custom_call.1} parent=1 // pred_check
      _
    $region35: #{tpu_custom_call.1} parent=1 // pred_check_branch
      %446 = sbr.rel (0) target = $region37
    $region36: #{tpu_custom_call.1} parent=1 // pred_region
      %447 = dma.done [#allocation3], 128
    $region37: #{tpu_custom_call.1} parent=1 // pred_fallthru
      _
    %448 = vsyncpa [#allocation3], 1

</llo_original>
